<compile_context>
chip_gen: v5e
topology: v5e:2x2
jax: 0.10.0
libtpu: 0.0.40
codegen_flags: <defaults>
</compile_context>

<pallas_src>
import math

import jax
import jax.numpy as jnp
from jax.experimental import pallas as pl
from jax.experimental.pallas import tpu as pltpu


# Below roughly one streamed block, the Pallas launch + per-step overhead
# cannot be amortized; let XLA fuse the plain jnp expression instead.
_PALLAS_MIN_BYTES = 512 * 1024


def _round_up(x, m):
    return ((x + m - 1) // m) * m


def _packing_rows(dtype):
    """Sublane packing factor: rows per vreg tile (8 f32, 16 bf16, 32 int8/fp8)."""
    return 8 * max(1, 4 // jnp.dtype(dtype).itemsize)


def _hw_budget():
    """(per-block byte target, explicit vmem_limit_bytes) -- generation aware."""
    try:
        cap = pltpu.get_tpu_info().vmem_capacity_bytes
    except Exception:
        cap = 64 << 20  # be conservative (v7x-sized VMEM) if the query fails
    if cap >= (100 << 20):
        # v5e / v6e: 128 MiB physical VMEM. 4 MiB blocks, double-buffered
        # logits + out ~= 16 MiB; raise the scoped limit explicitly so the
        # 16/32 MiB defaults never bite.
        return 4 << 20, 64 << 20
    # v7x: 64 MiB physical VMEM is the binding constraint.
    return 4 << 20, 32 << 20


def _choose_tiles(B, D, itemsize, packing, block_bytes):
    """Pick (tile_b, tile_d) for a lane-dense (B, D) slab (D % 128 == 0 or full)."""
    if packing * D * itemsize > block_bytes:
        # Very wide D (e.g. vocab-size logits): tile the lane axis too so the
        # double-buffered footprint stays bounded. tile_d % 128 == 0 keeps the
        # output lane-dense.
        tile_d = max(128, (block_bytes // (packing * itemsize)) // 128 * 128)
        return packing, tile_d

    tile_d = D
    row_bytes = D * itemsize
    rows = max(packing, (block_bytes // row_bytes) // packing * packing)

    # Megacore (v7x): keep >= 4 batch blocks (>= 2 per TensorCore) so each core
    # still double-buffers; also hides pipeline prologue/epilogue on v5e/v6e.
    if B >= 4 * packing:
        rows = min(rows, _round_up(pl.cdiv(B, 4), packing))
    if rows >= B:
        return B, tile_d

    # Prefer an even block count so the two TensorCores get equal work.
    n = pl.cdiv(B, rows)
    if n % 2 == 1:
        r2 = _round_up(pl.cdiv(B, n + 1), packing)
        if r2 >= packing and pl.cdiv(B, r2) % 2 == 0:
            rows = r2
    return rows, tile_d


def _platt_scale_kernel(ab_ref, x_ref, out_ref):
    # ab_ref:  (2, tile_d) float32, resident scale/shift (row 0 = a, row 1 = b).
    # x_ref / out_ref: (tile_b, tile_d) streamed tiles in the logits dtype.
    ab = ab_ref[...]
    a = ab[0:1, :]
    b = ab[1:2, :]
    x = x_ref[...].astype(jnp.float32)
    # FMA in f32 (params never quantized); cast only on the store.
    out_ref[...] = (a * x + b).astype(out_ref.dtype)


def platt_scale(logits, a, b, *, block_bytes=None, force=False, interpret=False):
    """out[n, d] = a[d] * logits[n, d] + b[d]. Output dtype matches logits dtype."""
    B, D = logits.shape
    out_dtype = logits.dtype
    itemsize = jnp.dtype(logits.dtype).itemsize
    packing = _packing_rows(logits.dtype)

    a32 = jnp.asarray(a, jnp.float32).reshape(1, D)
    b32 = jnp.asarray(b, jnp.float32).reshape(1, D)

    def _jnp_fallback(x):
        return (a32 * x.astype(jnp.float32) + b32).astype(out_dtype)

    nbytes = B * D * itemsize
    if not force and nbytes < _PALLAS_MIN_BYTES:
        # Tiny input: fused XLA elementwise already hits the HBM roofline.
        return _jnp_fallback(logits)

    default_block, vmem_limit = _hw_budget()
    if block_bytes is None:
        block_bytes = default_block

    # --- Lane-dense layout of the class axis ---------------------------------
    x = logits
    a_row, b_row = a32, b32
    unflatten = None
    if D % 128 != 0:
        L = (D * 128) // math.gcd(D, 128)  # lcm(D, 128)
        if (B * D) % L == 0 and L * itemsize <= block_bytes:
            # Zero-copy reshape to a lane-dense slab; a/b repeat with period D,
            # and D divides L, so tiling them to width L lines up exactly.
            reps = L // D
            x = logits.reshape(B * D // L, L)
            a_row = jnp.tile(a32, (1, reps))
            b_row = jnp.tile(b32, (1, reps))
            unflatten = lambda o: o.reshape(B, D)
        elif D >= 512:
            # Wide but ragged D: pad the lane axis (wasted traffic <= 127/D).
            Dp = _round_up(D, 128)
            x = jnp.pad(logits, ((0, 0), (0, Dp - D)))
            a_row = jnp.pad(a32, ((0, 0), (0, Dp - D)))
            b_row = jnp.pad(b32, ((0, 0), (0, Dp - D)))
            unflatten = lambda o: o[:, :D]
        else:
            # Awkward small-D shapes that can't be made lane-dense cheaply:
            # a lane-sparse Pallas store path would only be slower than XLA.
            return _jnp_fallback(logits)

    Bx, Dx = x.shape
    tile_b, tile_d = _choose_tiles(Bx, Dx, itemsize, packing, block_bytes)

    # Single resident (2, Dx) f32 scale/shift input (one constant-index spec).
    ab = jnp.concatenate([a_row, b_row], axis=0)

    grid = (pl.cdiv(Bx, tile_b), pl.cdiv(Dx, tile_d))

    out = pl.pallas_call(
        _platt_scale_kernel,
        out_shape=jax.ShapeDtypeStruct((Bx, Dx), out_dtype),
        grid_spec=pl.GridSpec(
            grid=grid,
            in_specs=[
                # a/b: constant along the batch axis -> DMA'd once per D-block
                # and kept resident in VMEM.
                pl.BlockSpec((2, tile_d), lambda i, j: (0, j)),
                # logits: streamed, lane-dense blocks.
                # (Buffered(3) on this spec + out_spec is a sweep candidate.)
                pl.BlockSpec((tile_b, tile_d), lambda i, j: (i, j)),
            ],
            out_specs=pl.BlockSpec((tile_b, tile_d), lambda i, j: (i, j)),
        ),
        compiler_params=pltpu.CompilerParams(
            dimension_semantics=("parallel", "parallel"),
            vmem_limit_bytes=vmem_limit,
        ),
        interpret=interpret,
    )(ab, x)

    return unflatten(out) if unflatten is not None else out


class PlatScalingPallas:
    """Mirrors PlatScaling.__init__ parameter init: a = ones(num_dim), b = zeros(num_dim)."""

    def __init__(self, num_dim):
        self.num_dim = num_dim
        self.a = jnp.ones((num_dim,), dtype=jnp.float32) * 1.0
        self.b = jnp.ones((num_dim,), dtype=jnp.float32) * 0.0

    def __call__(self, logits):
        return platt_scale(logits, self.a, self.b)


if __name__ == "__main__":
    key = jax.random.PRNGKey(0)
    ka, kb, k1, k2, k3, k4 = jax.random.split(key, 6)

    def ref_fn(x, a, b):
        return (a.reshape(1, -1).astype(jnp.float32) * x.astype(jnp.float32)
                + b.reshape(1, -1).astype(jnp.float32)).astype(x.dtype)

    # 1) Main streamed path (D % 128 == 0): megacore-aware tiling -> 4 blocks.
    B1, D1 = 2048, 128
    model = PlatScalingPallas(D1)
    model.a = model.a + 0.1 * jax.random.normal(ka, (D1,), dtype=jnp.float32)
    model.b = model.b + 0.1 * jax.random.normal(kb, (D1,), dtype=jnp.float32)
    x1 = jax.random.normal(k1, (B1, D1), dtype=jnp.float32)
    o1 = jax.block_until_ready(model(x1))
    assert jnp.allclose(o1, ref_fn(x1, model.a, model.b), atol=1e-5), "mismatch (main path)"

    # 2) Small class count (D=10), bf16 logits: lane-dense flatten path,
    #    f32 params kept un-quantized inside the kernel.
    B2, D2 = 1024, 10
    a2 = 1.0 + 0.1 * jax.random.normal(ka, (D2,), dtype=jnp.float32)
    b2 = 0.1 * jax.random.normal(kb, (D2,), dtype=jnp.float32)
    x2 = jax.random.normal(k2, (B2, D2), dtype=jnp.bfloat16)
    o2 = jax.block_until_ready(platt_scale(x2, a2, b2, force=True))
    assert jnp.allclose(o2.astype(jnp.float32), ref_fn(x2, a2, b2).astype(jnp.float32),
                        atol=2e-2), "mismatch (flatten path)"

    # 3) D-tiling path (forced tiny block budget to exercise the 2-D grid).
    B3, D3 = 64, 1024
    a3 = 1.0 + 0.1 * jax.random.normal(ka, (D3,), dtype=jnp.float32)
    b3 = 0.1 * jax.random.normal(kb, (D3,), dtype=jnp.float32)
    x3 = jax.random.normal(k3, (B3, D3), dtype=jnp.float32)
    o3 = jax.block_until_ready(platt_scale(x3, a3, b3, block_bytes=16 * 1024, force=True))
    assert jnp.allclose(o3, ref_fn(x3, a3, b3), atol=1e-5), "mismatch (D-tiled path)"

    # 4) Tiny-input fallback (below one block -> plain fused jnp).
    x4 = jax.random.normal(k4, (8, D1), dtype=jnp.float32)
    o4 = jax.block_until_ready(platt_scale(x4, model.a, model.b))
    assert jnp.allclose(o4, ref_fn(x4, model.a, model.b), atol=1e-5), "mismatch (fallback path)"

    print("KERNEL_OK")
</pallas_src>

<mosaic_0001>
module attributes {stable_mosaic.version = 11 : i64} {
  func.func @_platt_scale_kernel(%arg0: i32, %arg1: i32, %arg2: memref<2x128xf32, #tpu.memory_space<vmem>>, %arg3: memref<512x128xf32, #tpu.memory_space<vmem>>, %arg4: memref<512x128xf32, #tpu.memory_space<vmem>>) attributes {dimension_semantics = [#tpu.dimension_semantics<parallel>, #tpu.dimension_semantics<parallel>], iteration_bounds = array<i64: 4, 1>, scalar_prefetch = 0 : i64, scratch_operands = 0 : i64, tpu.core_type = #tpu.core_type<tc>, window_params = [{transform_indices = @transform_0, window_bounds = array<i64: 2, 128>}, {transform_indices = @transform_1, window_bounds = array<i64: 512, 128>}, {transform_indices = @transform_2, window_bounds = array<i64: 512, 128>}]} {
    %c0 = arith.constant 0 : index
    %c0_0 = arith.constant 0 : index
    %0 = vector.load %arg2[%c0, %c0_0] : memref<2x128xf32, #tpu.memory_space<vmem>>, vector<2x128xf32>
    %1 = vector.extract_strided_slice %0 {offsets = [0, 0], sizes = [1, 128], strides = [1, 1]} : vector<2x128xf32> to vector<1x128xf32>
    %2 = vector.extract_strided_slice %0 {offsets = [1, 0], sizes = [1, 128], strides = [1, 1]} : vector<2x128xf32> to vector<1x128xf32>
    %c0_1 = arith.constant 0 : index
    %c0_2 = arith.constant 0 : index
    %3 = vector.load %arg3[%c0_1, %c0_2] : memref<512x128xf32, #tpu.memory_space<vmem>>, vector<512x128xf32>
    %4 = vector.broadcast %1 : vector<1x128xf32> to vector<512x128xf32>
    %5 = arith.mulf %4, %3 : vector<512x128xf32>
    %6 = vector.broadcast %2 : vector<1x128xf32> to vector<512x128xf32>
    %7 = arith.addf %5, %6 : vector<512x128xf32>
    %c0_3 = arith.constant 0 : index
    %c0_4 = arith.constant 0 : index
    %8 = vector.load %arg4[%c0_3, %c0_4] : memref<512x128xf32, #tpu.memory_space<vmem>>, vector<512x128xf32>
    tpu.vector_store %arg4[%c0_3, %c0_4], %7 {strides = array<i32>} : memref<512x128xf32, #tpu.memory_space<vmem>>, vector<512x128xf32>,
    return
  }
  func.func @transform_0(%arg0: i32, %arg1: i32) -> (i32, i32) {
    %c0_i32 = arith.constant 0 : i32
    %c0_i32_0 = arith.constant 0 : i32
    return %c0_i32, %arg1 : i32, i32
  }
  func.func @transform_1(%arg0: i32, %arg1: i32) -> (i32, i32) {
    %c0_i32 = arith.constant 0 : i32
    return %arg0, %arg1 : i32, i32
  }
  func.func @transform_2(%arg0: i32, %arg1: i32) -> (i32, i32) {
    %c0_i32 = arith.constant 0 : i32
    return %arg0, %arg1 : i32, i32
  }
}

</mosaic_0001>

<llo_original>
// kernel: tpu_custom_call.1
$region0: #{tpu_custom_call.1}
  #allocation0 [shape = 'u32[]', space=smem, size = 0x4, offset = 0x4, fixed_abs, tag = 'smem constant byte address 0x4 - core index']
  #allocation1 [shape = 'u32[72,128]{1,0:T(1,128)}', space=vmem, size = 0x9000, scoped, tag = 'internal scratch']
  %s0 = inlined_call_operand.hbm [shape: f32[2,128], index: 0, kind: input, shape index: {}]
  %s1 = inlined_call_operand.hbm [shape: f32[2048,128], index: 1, kind: input, shape index: {}]
  %s2 = inlined_call_operand.hbm [shape: f32[2048,128], index: 2, kind: output, shape index: {}]
  %s3 = sld [smem:[#allocation0]]
  $region49: #{tpu_custom_call.1} parent=0
    _
  %s5 = ssub.s32 1, %s3
  %s6 = scalar_select 0, %s5, %s3
  $region1: #{tpu_custom_call.1} parent=0
    #allocation2 [shape = 'u8[1024]{0}', space=vmem, size = 0x400, scoped, tag = 'input window, operand 0, single buffered']
    #allocation3 [shape = 's32[2]{0}', space=sflag, size = 0x8, scoped, tag = 'scoped memory for tpu_custom_call.1']
    #allocation4 [shape = 's32[2]{0}', space=sflag, size = 0x8, scoped, tag = 'scoped memory for tpu_custom_call.1']
    #allocation5 [shape = 'u8[524288]{0}', space=vmem, size = 0x80000, scoped, tag = 'input window, operand 1']
    #allocation6 [shape = 's32[2]{0}', space=sflag, size = 0x8, scoped, tag = 'scoped memory for tpu_custom_call.1']
    #allocation7 [shape = 'u8[524288]{0}', space=vmem, size = 0x80000, scoped, tag = 'output window, operand 0']
    %7 = vsyncpa [#allocation3], 0
    %8 = vsyncpa [#allocation6], 0
    %s9 = scalar_lea.sflag [#allocation6], 1
    %10 = vsyncpa %s9, 0
    %11 = vsyncpa [#allocation4], 0
    %s12 = scalar_lea.sflag [#allocation4], 1
    %13 = vsyncpa %s12, 0
    loop: start=0, step=1, limit=6
    $region2: #{tpu_custom_call.1} parent=1 // loop_pre_header
      _
    $region3: #{tpu_custom_call.1} parent=1 // loop_header
      %s15 = sphi 0, %s19
      %p16 = scmp.ge.s32.totalorder %s15, 6
      %s22 = sphi 0, %s34
      %s23 = sphi 0, %s30
      %s24 = sphi 0, %s22
      %s25 = sphi 0, %s23
      %s26 = sphi 0, %s24
      %s27 = sphi 0, %s25
      %s37 = sphi 0, %s39
      %s40 = sphi 0, %s37
      %s41 = sphi 0, %s40
      %s57 = sphi 0, %s41
      %s65 = sphi 0, %s67
      %s68 = sphi 0, %s65
      %s69 = sphi 0, %s68
      %s85 = sphi 0, %s69
      %s93 = sphi 0, %s95
      %s96 = sphi 0, %s93
      %s97 = sphi 0, %s96
      %s113 = sphi 0, %s97
    $region4: #{tpu_custom_call.1} parent=1 // loop_header_branch
      %18 = sbr.rel (%p16) target = $region8
    $region5: #{tpu_custom_call.1} parent=1 // loop_body
      %s20 = ssub.s32 %s15, 1
      %s21 = ssub.s32 %s15, 2
      %s28 = sadd.s32 1, %s23
      %p29 = scmp.ge.s32.totalorder %s28, 1
      %s30 = scalar_select %p29, 0, %s28
      %s31 = sadd.s32 1, %s22
      %s32 = scalar_select %p29, %s31, %s22
      %p33 = scmp.ge.s32.totalorder %s32, 4
      %s34 = scalar_select %p33, 0, %s32
      %s35 = ssub.s32 %s23, %s30
      %p36 = scmp.eq.s32.totalorder %s35, 0
      %s38 = sadd.s32 %s37, 1
      %s39 = scalar_select %p36, %s37, %s38
      %p42 = pneg %p36
      %p43 = scmp.eq.s32.totalorder %s15, 3
      %p44 = por %p42, %p43
      %p45 = scmp.ne.s32.totalorder %s37, %s40
      %p46 = scmp.eq.s32.totalorder %s15, 0
      %p47 = por %p45, %p46
      %p48 = scmp.ne.s32.totalorder %s37, %s40
      %p49 = scmp.eq.s32.totalorder %s20, 3
      %p50 = por %p48, %p49
      %p51 = scmp.ne.s32.totalorder %s40, %s41
      %p52 = scmp.eq.s32.totalorder %s20, 0
      %p53 = por %p51, %p52
      %p54 = scmp.ne.s32.totalorder %s40, %s41
      %p55 = scmp.eq.s32.totalorder %s21, 3
      %p56 = por %p54, %p55
      %p58 = scmp.ne.s32.totalorder %s41, %s57
      %p59 = scmp.eq.s32.totalorder %s21, 0
      %p60 = por %p58, %p59
      %s61 = ssub.s32 %s22, %s34
      %s62 = ssub.s32 %s23, %s30
      %s63 = sor.u32 %s61, %s62
      %p64 = scmp.eq.s32.totalorder %s63, 0
      %s66 = sadd.s32 %s65, 1
      %s67 = scalar_select %p64, %s65, %s66
      %p70 = pneg %p64
      %p71 = scmp.eq.s32.totalorder %s15, 3
      %p72 = por %p70, %p71
      %p73 = scmp.ne.s32.totalorder %s65, %s68
      %p74 = scmp.eq.s32.totalorder %s15, 0
      %p75 = por %p73, %p74
      %p76 = scmp.ne.s32.totalorder %s65, %s68
      %p77 = scmp.eq.s32.totalorder %s20, 3
      %p78 = por %p76, %p77
      %p79 = scmp.ne.s32.totalorder %s68, %s69
      %p80 = scmp.eq.s32.totalorder %s20, 0
      %p81 = por %p79, %p80
      %p82 = scmp.ne.s32.totalorder %s68, %s69
      %p83 = scmp.eq.s32.totalorder %s21, 3
      %p84 = por %p82, %p83
      %p86 = scmp.ne.s32.totalorder %s69, %s85
      %p87 = scmp.eq.s32.totalorder %s21, 0
      %p88 = por %p86, %p87
      %s89 = ssub.s32 %s22, %s34
      %s90 = ssub.s32 %s23, %s30
      %s91 = sor.u32 %s89, %s90
      %p92 = scmp.eq.s32.totalorder %s91, 0
      %s94 = sadd.s32 %s93, 1
      %s95 = scalar_select %p92, %s93, %s94
      %p98 = pneg %p92
      %p99 = scmp.eq.s32.totalorder %s15, 3
      %p100 = por %p98, %p99
      %p101 = scmp.ne.s32.totalorder %s93, %s96
      %p102 = scmp.eq.s32.totalorder %s15, 0
      %p103 = por %p101, %p102
      %p104 = scmp.ne.s32.totalorder %s93, %s96
      %p105 = scmp.eq.s32.totalorder %s20, 3
      %p106 = por %p104, %p105
      %p107 = scmp.ne.s32.totalorder %s96, %s97
      %p108 = scmp.eq.s32.totalorder %s20, 0
      %p109 = por %p107, %p108
      %p110 = scmp.ne.s32.totalorder %s96, %s97
      %p111 = scmp.eq.s32.totalorder %s21, 3
      %p112 = por %p110, %p111
      %p114 = scmp.ne.s32.totalorder %s97, %s113
      %p115 = scmp.eq.s32.totalorder %s21, 0
      %p116 = por %p114, %p115
      %p117 = scmp.le.s32.totalorder 1, %s15
      %p118 = scmp.lt.s32.totalorder %s15, 5
      %p119 = pnand %p117, %p118
      %p120 = pneg %p119
      // Predicated region
      $region9: #{tpu_custom_call.1} parent=5 // pred_check
        _
      $region10: #{tpu_custom_call.1} parent=5 // pred_check_branch
        %122 = sbr.rel (%p119) target = $region12
      $region11: #{tpu_custom_call.1} parent=5 // pred_region
        %s123 = ssub.s32 %s15, 1
        // Predicated region
        $region13: #{tpu_custom_call.1} parent=11 // pred_check
          %p124 = pneg %p53
        $region14: #{tpu_custom_call.1} parent=11 // pred_check_branch
          %126 = sbr.rel (%p124) target = $region16
        $region15: #{tpu_custom_call.1} parent=11 // pred_region
          %128 = vsyncadd [#allocation3], 0
          %s129 = smul.addr %s25, 2
          %s130 = scalar_lea.hbm %s0, %s129
          %s132 = sshll.u32 %s130, 4
          %s133 = int_to_ptr.hbm [resolvable:$true] %s132
          %s134 = sshll.u32 [#allocation2], 4
          %s135 = int_to_ptr.vmem [resolvable:$true] %s134
          %137 = dma.hbm_to_vmem [thread:$0]  %s133, 32, %s135, [#allocation3]
        $region16: #{tpu_custom_call.1} parent=11 // pred_fallthru
          _
      $region12: #{tpu_custom_call.1} parent=5 // pred_fallthru
        _
      %p138 = scmp.lt.s32.totalorder %s15, 4
      // Predicated region
      $region17: #{tpu_custom_call.1} parent=5 // pred_check
        %p139 = pneg %p138
      $region18: #{tpu_custom_call.1} parent=5 // pred_check_branch
        %141 = sbr.rel (%p139) target = $region20
      $region19: #{tpu_custom_call.1} parent=5 // pred_region
        // Predicated region
        $region21: #{tpu_custom_call.1} parent=19 // pred_check
          %p142 = pneg %p75
        $region22: #{tpu_custom_call.1} parent=19 // pred_check_branch
          %144 = sbr.rel (%p142) target = $region24
        $region23: #{tpu_custom_call.1} parent=19 // pred_region
          %s145 = sand.u32 %s65, 1
          %s146 = scalar_lea.sflag [#allocation6], %s145
          %s147 = sand.u32 %s65, 1
          %s148 = smul.addr %s147, 512
          %s149 = scalar_lea.vmem [#allocation5], %s148
          %s150 = smul.u32 64, %s22
          %152 = vsyncadd %s146, 0
          %s153 = sadd.s32 %s23, %s150
          %s154 = smul.addr %s153, 8
          %s155 = scalar_lea.hbm %s1, %s154
          %s156 = sshll.u32 %s155, 4
          %s157 = int_to_ptr.hbm [resolvable:$true] %s156
          %s158 = sshll.u32 %s149, 4
          %s159 = int_to_ptr.vmem [resolvable:$true] %s158
          %164 = dma.hbm_to_vmem [thread:$0]  %s157, 8192, %s159, %s146, 128, 128, 8
        $region24: #{tpu_custom_call.1} parent=19 // pred_fallthru
          _
      $region20: #{tpu_custom_call.1} parent=5 // pred_fallthru
        _
      %p165 = scmp.le.s32.totalorder 1, %s15
      %p166 = scmp.lt.s32.totalorder %s15, 5
      %p167 = pnand %p165, %p166
      %p168 = pneg %p167
      // Predicated region
      $region25: #{tpu_custom_call.1} parent=5 // pred_check
        _
      $region26: #{tpu_custom_call.1} parent=5 // pred_check_branch
        %170 = sbr.rel (%p167) target = $region28
      $region27: #{tpu_custom_call.1} parent=5 // pred_region
        %s171 = ssub.s32 %s15, 1
        // Predicated region
        $region29: #{tpu_custom_call.1} parent=27 // pred_check
          %p172 = pneg %p53
        $region30: #{tpu_custom_call.1} parent=27 // pred_check_branch
          %174 = sbr.rel (%p172) target = $region32
        $region31: #{tpu_custom_call.1} parent=27 // pred_region
          %176 = dma.done [#allocation3], 32
        $region32: #{tpu_custom_call.1} parent=27 // pred_fallthru
          _
        %s177 = sand.u32 %s68, 1
        %s178 = scalar_lea.sflag [#allocation6], %s177
        %s179 = sand.u32 %s68, 1
        %s180 = smul.addr %s179, 512
        %s181 = scalar_lea.vmem [#allocation5], %s180
        // Predicated region
        $region33: #{tpu_custom_call.1} parent=27 // pred_check
          %p182 = pneg %p81
        $region34: #{tpu_custom_call.1} parent=27 // pred_check_branch
          %184 = sbr.rel (%p182) target = $region36
        $region35: #{tpu_custom_call.1} parent=27 // pred_region
          %186 = dma.done %s178, 8192
        $region36: #{tpu_custom_call.1} parent=27 // pred_fallthru
          _
        %p187 = pneg %p53
        %p188 = pneg %p50
        %s189 = sand.u32 %s68, 1
        %s190 = scalar_lea.sflag [#allocation6], %s189
        %s191 = sand.u32 %s68, 1
        %s192 = smul.addr %s191, 512
        %s193 = scalar_lea.vmem [#allocation5], %s192
        %p194 = pneg %p81
        %p195 = pneg %p78
        %p196 = pneg %p109
        %p197 = pneg %p106
        %s198 = sand.u32 %s96, 1
        %s199 = scalar_lea.sflag [#allocation4], %s198
        %s200 = sand.u32 %s96, 1
        %s201 = smul.addr %s200, 512
        %s202 = scalar_lea.vmem [#allocation7], %s201
        %s203 = smul.u32 64, %s24
        %s204 = smul.u32 64, %s24
        %v205 = vld [vmem:[#allocation2] sm:$0x3]
        %v206 = vld [vmem:[%s181] sm:$0xff]
        %v207 = vld [vmem:[%s181 + $0x8] sm:$0xff]
        %v208 = vld [vmem:[%s181 + $0x10] sm:$0xff]
        %v209 = vld [vmem:[%s181 + $0x18] sm:$0xff]
        %v210 = vld [vmem:[%s181 + $0x20] sm:$0xff]
        %v211 = vld [vmem:[%s181 + $0x28] sm:$0xff]
        %v212 = vld [vmem:[%s181 + $0x30] sm:$0xff]
        %v213 = vld [vmem:[%s181 + $0x38] sm:$0xff]
        %v214 = vld [vmem:[%s181 + $0x40] sm:$0xff]
        %v215 = vld [vmem:[%s181 + $0x48] sm:$0xff]
        %v216 = vld [vmem:[%s181 + $0x50] sm:$0xff]
        %v217 = vld [vmem:[%s181 + $0x58] sm:$0xff]
        %v218 = vld [vmem:[%s181 + $0x60] sm:$0xff]
        %v219 = vld [vmem:[%s181 + $0x68] sm:$0xff]
        %v220 = vld [vmem:[%s181 + $0x70] sm:$0xff]
        %v221 = vld [vmem:[%s181 + $0x78] sm:$0xff]
        %v222 = vld [vmem:[%s181 + $0x80] sm:$0xff]
        %v223 = vld [vmem:[%s181 + $0x88] sm:$0xff]
        %v224 = vld [vmem:[%s181 + $0x90] sm:$0xff]
        %v225 = vld [vmem:[%s181 + $0x98] sm:$0xff]
        %v226 = vld [vmem:[%s181 + $0xa0] sm:$0xff]
        %v227 = vld [vmem:[%s181 + $0xa8] sm:$0xff]
        %v228 = vld [vmem:[%s181 + $0xb0] sm:$0xff]
        %v229 = vld [vmem:[%s181 + $0xb8] sm:$0xff]
        %v230 = vld [vmem:[%s181 + $0xc0] sm:$0xff]
        %v231 = vld [vmem:[%s181 + $0xc8] sm:$0xff]
        %v232 = vld [vmem:[%s181 + $0xd0] sm:$0xff]
        %v233 = vld [vmem:[%s181 + $0xd8] sm:$0xff]
        %v234 = vld [vmem:[%s181 + $0xe0] sm:$0xff]
        %v235 = vld [vmem:[%s181 + $0xe8] sm:$0xff]
        %v236 = vld [vmem:[%s181 + $0xf0] sm:$0xff]
        %v237 = vld [vmem:[%s181 + $0xf8] sm:$0xff]
        %v238 = vld [vmem:[%s181 + $0x100] sm:$0xff]
        %v239 = vld [vmem:[%s181 + $0x108] sm:$0xff]
        %v240 = vld [vmem:[%s181 + $0x110] sm:$0xff]
        %v241 = vld [vmem:[%s181 + $0x118] sm:$0xff]
        %v242 = vld [vmem:[%s181 + $0x120] sm:$0xff]
        %v243 = vld [vmem:[%s181 + $0x128] sm:$0xff]
        %v244 = vld [vmem:[%s181 + $0x130] sm:$0xff]
        %v245 = vld [vmem:[%s181 + $0x138] sm:$0xff]
        %v246 = vld [vmem:[%s181 + $0x140] sm:$0xff]
        %v247 = vld [vmem:[%s181 + $0x148] sm:$0xff]
        %v248 = vld [vmem:[%s181 + $0x150] sm:$0xff]
        %v249 = vld [vmem:[%s181 + $0x158] sm:$0xff]
        %v250 = vld [vmem:[%s181 + $0x160] sm:$0xff]
        %v251 = vld [vmem:[%s181 + $0x168] sm:$0xff]
        %v252 = vld [vmem:[%s181 + $0x170] sm:$0xff]
        %v253 = vld [vmem:[%s181 + $0x178] sm:$0xff]
        %v254 = vld [vmem:[%s181 + $0x180] sm:$0xff]
        %v255 = vld [vmem:[%s181 + $0x188] sm:$0xff]
        %v256 = vld [vmem:[%s181 + $0x190] sm:$0xff]
        %v257 = vld [vmem:[%s181 + $0x198] sm:$0xff]
        %v258 = vld [vmem:[%s181 + $0x1a0] sm:$0xff]
        %v259 = vld [vmem:[%s181 + $0x1a8] sm:$0xff]
        %v260 = vld [vmem:[%s181 + $0x1b0] sm:$0xff]
        %v261 = vld [vmem:[%s181 + $0x1b8] sm:$0xff]
        %v262 = vld [vmem:[%s181 + $0x1c0] sm:$0xff]
        %v263 = vld [vmem:[%s181 + $0x1c8] sm:$0xff]
        %v264 = vld [vmem:[%s181 + $0x1d0] sm:$0xff]
        %v265 = vld [vmem:[%s181 + $0x1d8] sm:$0xff]
        %v266 = vld [vmem:[%s181 + $0x1e0] sm:$0xff]
        %v267 = vld [vmem:[%s181 + $0x1e8] sm:$0xff]
        %v268 = vld [vmem:[%s181 + $0x1f0] sm:$0xff]
        %v269 = vld [vmem:[%s181 + $0x1f8] sm:$0xff]
        %v270 = vperm.slane %v205, 0
        %v271 = vmul.f32 %v270, %v206
        %v272 = vmul.f32 %v270, %v207
        %v273 = vmul.f32 %v270, %v208
        %v274 = vmul.f32 %v270, %v209
        %v275 = vmul.f32 %v270, %v210
        %v276 = vmul.f32 %v270, %v211
        %v277 = vmul.f32 %v270, %v212
        %v278 = vmul.f32 %v270, %v213
        %v279 = vmul.f32 %v270, %v214
        %v280 = vmul.f32 %v270, %v215
        %v281 = vmul.f32 %v270, %v216
        %v282 = vmul.f32 %v270, %v217
        %v283 = vmul.f32 %v270, %v218
        %v284 = vmul.f32 %v270, %v219
        %v285 = vmul.f32 %v270, %v220
        %v286 = vmul.f32 %v270, %v221
        %v287 = vmul.f32 %v270, %v222
        %v288 = vmul.f32 %v270, %v223
        %v289 = vmul.f32 %v270, %v224
        %v290 = vmul.f32 %v270, %v225
        %v291 = vmul.f32 %v270, %v226
        %v292 = vmul.f32 %v270, %v227
        %v293 = vmul.f32 %v270, %v228
        %v294 = vmul.f32 %v270, %v229
        %v295 = vmul.f32 %v270, %v230
        %v296 = vmul.f32 %v270, %v231
        %v297 = vmul.f32 %v270, %v232
        %v298 = vmul.f32 %v270, %v233
        %v299 = vmul.f32 %v270, %v234
        %v300 = vmul.f32 %v270, %v235
        %v301 = vmul.f32 %v270, %v236
        %v302 = vmul.f32 %v270, %v237
        %v303 = vmul.f32 %v270, %v238
        %v304 = vmul.f32 %v270, %v239
        %v305 = vmul.f32 %v270, %v240
        %v306 = vmul.f32 %v270, %v241
        %v307 = vmul.f32 %v270, %v242
        %v308 = vmul.f32 %v270, %v243
        %v309 = vmul.f32 %v270, %v244
        %v310 = vmul.f32 %v270, %v245
        %v311 = vmul.f32 %v270, %v246
        %v312 = vmul.f32 %v270, %v247
        %v313 = vmul.f32 %v270, %v248
        %v314 = vmul.f32 %v270, %v249
        %v315 = vmul.f32 %v270, %v250
        %v316 = vmul.f32 %v270, %v251
        %v317 = vmul.f32 %v270, %v252
        %v318 = vmul.f32 %v270, %v253
        %v319 = vmul.f32 %v270, %v254
        %v320 = vmul.f32 %v270, %v255
        %v321 = vmul.f32 %v270, %v256
        %v322 = vmul.f32 %v270, %v257
        %v323 = vmul.f32 %v270, %v258
        %v324 = vmul.f32 %v270, %v259
        %v325 = vmul.f32 %v270, %v260
        %v326 = vmul.f32 %v270, %v261
        %v327 = vmul.f32 %v270, %v262
        %v328 = vmul.f32 %v270, %v263
        %v329 = vmul.f32 %v270, %v264
        %v330 = vmul.f32 %v270, %v265
        %v331 = vmul.f32 %v270, %v266
        %v332 = vmul.f32 %v270, %v267
        %v333 = vmul.f32 %v270, %v268
        %v334 = vmul.f32 %v270, %v269
        %v335 = vperm.slane %v205, 1
        %v336 = vadd.f32 %v271, %v335
        %v337 = vadd.f32 %v272, %v335
        %v338 = vadd.f32 %v273, %v335
        %v339 = vadd.f32 %v274, %v335
        %v340 = vadd.f32 %v275, %v335
        %v341 = vadd.f32 %v276, %v335
        %v342 = vadd.f32 %v277, %v335
        %v343 = vadd.f32 %v278, %v335
        %v344 = vadd.f32 %v279, %v335
        %v345 = vadd.f32 %v280, %v335
        %v346 = vadd.f32 %v281, %v335
        %v347 = vadd.f32 %v282, %v335
        %v348 = vadd.f32 %v283, %v335
        %v349 = vadd.f32 %v284, %v335
        %v350 = vadd.f32 %v285, %v335
        %v351 = vadd.f32 %v286, %v335
        %v352 = vadd.f32 %v287, %v335
        %v353 = vadd.f32 %v288, %v335
        %v354 = vadd.f32 %v289, %v335
        %v355 = vadd.f32 %v290, %v335
        %v356 = vadd.f32 %v291, %v335
        %v357 = vadd.f32 %v292, %v335
        %v358 = vadd.f32 %v293, %v335
        %v359 = vadd.f32 %v294, %v335
        %v360 = vadd.f32 %v295, %v335
        %v361 = vadd.f32 %v296, %v335
        %v362 = vadd.f32 %v297, %v335
        %v363 = vadd.f32 %v298, %v335
        %v364 = vadd.f32 %v299, %v335
        %v365 = vadd.f32 %v300, %v335
        %v366 = vadd.f32 %v301, %v335
        %v367 = vadd.f32 %v302, %v335
        %v368 = vadd.f32 %v303, %v335
        %v369 = vadd.f32 %v304, %v335
        %v370 = vadd.f32 %v305, %v335
        %v371 = vadd.f32 %v306, %v335
        %v372 = vadd.f32 %v307, %v335
        %v373 = vadd.f32 %v308, %v335
        %v374 = vadd.f32 %v309, %v335
        %v375 = vadd.f32 %v310, %v335
        %v376 = vadd.f32 %v311, %v335
        %v377 = vadd.f32 %v312, %v335
        %v378 = vadd.f32 %v313, %v335
        %v379 = vadd.f32 %v314, %v335
        %v380 = vadd.f32 %v315, %v335
        %v381 = vadd.f32 %v316, %v335
        %v382 = vadd.f32 %v317, %v335
        %v383 = vadd.f32 %v318, %v335
        %v384 = vadd.f32 %v319, %v335
        %v385 = vadd.f32 %v320, %v335
        %v386 = vadd.f32 %v321, %v335
        %v387 = vadd.f32 %v322, %v335
        %v388 = vadd.f32 %v323, %v335
        %v389 = vadd.f32 %v324, %v335
        %v390 = vadd.f32 %v325, %v335
        %v391 = vadd.f32 %v326, %v335
        %v392 = vadd.f32 %v327, %v335
        %v393 = vadd.f32 %v328, %v335
        %v394 = vadd.f32 %v329, %v335
        %v395 = vadd.f32 %v330, %v335
        %v396 = vadd.f32 %v331, %v335
        %v397 = vadd.f32 %v332, %v335
        %v398 = vadd.f32 %v333, %v335
        %v399 = vadd.f32 %v334, %v335
        %400 = vst [vmem:[%s202] sm:$0xff] %v336
        %401 = vst [vmem:[%s202 + $0x8] sm:$0xff] %v337
        %402 = vst [vmem:[%s202 + $0x10] sm:$0xff] %v338
        %403 = vst [vmem:[%s202 + $0x18] sm:$0xff] %v339
        %404 = vst [vmem:[%s202 + $0x20] sm:$0xff] %v340
        %405 = vst [vmem:[%s202 + $0x28] sm:$0xff] %v341
        %406 = vst [vmem:[%s202 + $0x30] sm:$0xff] %v342
        %407 = vst [vmem:[%s202 + $0x38] sm:$0xff] %v343
        %408 = vst [vmem:[%s202 + $0x40] sm:$0xff] %v344
        %409 = vst [vmem:[%s202 + $0x48] sm:$0xff] %v345
        %410 = vst [vmem:[%s202 + $0x50] sm:$0xff] %v346
        %411 = vst [vmem:[%s202 + $0x58] sm:$0xff] %v347
        %412 = vst [vmem:[%s202 + $0x60] sm:$0xff] %v348
        %413 = vst [vmem:[%s202 + $0x68] sm:$0xff] %v349
        %414 = vst [vmem:[%s202 + $0x70] sm:$0xff] %v350
        %415 = vst [vmem:[%s202 + $0x78] sm:$0xff] %v351
        %416 = vst [vmem:[%s202 + $0x80] sm:$0xff] %v352
        %417 = vst [vmem:[%s202 + $0x88] sm:$0xff] %v353
        %418 = vst [vmem:[%s202 + $0x90] sm:$0xff] %v354
        %419 = vst [vmem:[%s202 + $0x98] sm:$0xff] %v355
        %420 = vst [vmem:[%s202 + $0xa0] sm:$0xff] %v356
        %421 = vst [vmem:[%s202 + $0xa8] sm:$0xff] %v357
        %422 = vst [vmem:[%s202 + $0xb0] sm:$0xff] %v358
        %423 = vst [vmem:[%s202 + $0xb8] sm:$0xff] %v359
        %424 = vst [vmem:[%s202 + $0xc0] sm:$0xff] %v360
        %425 = vst [vmem:[%s202 + $0xc8] sm:$0xff] %v361
        %426 = vst [vmem:[%s202 + $0xd0] sm:$0xff] %v362
        %427 = vst [vmem:[%s202 + $0xd8] sm:$0xff] %v363
        %428 = vst [vmem:[%s202 + $0xe0] sm:$0xff] %v364
        %429 = vst [vmem:[%s202 + $0xe8] sm:$0xff] %v365
        %430 = vst [vmem:[%s202 + $0xf0] sm:$0xff] %v366
        %431 = vst [vmem:[%s202 + $0xf8] sm:$0xff] %v367
        %432 = vst [vmem:[%s202 + $0x100] sm:$0xff] %v368
        %433 = vst [vmem:[%s202 + $0x108] sm:$0xff] %v369
        %434 = vst [vmem:[%s202 + $0x110] sm:$0xff] %v370
        %435 = vst [vmem:[%s202 + $0x118] sm:$0xff] %v371
        %436 = vst [vmem:[%s202 + $0x120] sm:$0xff] %v372
        %437 = vst [vmem:[%s202 + $0x128] sm:$0xff] %v373
        %438 = vst [vmem:[%s202 + $0x130] sm:$0xff] %v374
        %439 = vst [vmem:[%s202 + $0x138] sm:$0xff] %v375
        %440 = vst [vmem:[%s202 + $0x140] sm:$0xff] %v376
        %441 = vst [vmem:[%s202 + $0x148] sm:$0xff] %v377
        %442 = vst [vmem:[%s202 + $0x150] sm:$0xff] %v378
        %443 = vst [vmem:[%s202 + $0x158] sm:$0xff] %v379
        %444 = vst [vmem:[%s202 + $0x160] sm:$0xff] %v380
        %445 = vst [vmem:[%s202 + $0x168] sm:$0xff] %v381
        %446 = vst [vmem:[%s202 + $0x170] sm:$0xff] %v382
        %447 = vst [vmem:[%s202 + $0x178] sm:$0xff] %v383
        %448 = vst [vmem:[%s202 + $0x180] sm:$0xff] %v384
        %449 = vst [vmem:[%s202 + $0x188] sm:$0xff] %v385
        %450 = vst [vmem:[%s202 + $0x190] sm:$0xff] %v386
        %451 = vst [vmem:[%s202 + $0x198] sm:$0xff] %v387
        %452 = vst [vmem:[%s202 + $0x1a0] sm:$0xff] %v388
        %453 = vst [vmem:[%s202 + $0x1a8] sm:$0xff] %v389
        %454 = vst [vmem:[%s202 + $0x1b0] sm:$0xff] %v390
        %455 = vst [vmem:[%s202 + $0x1b8] sm:$0xff] %v391
        %456 = vst [vmem:[%s202 + $0x1c0] sm:$0xff] %v392
        %457 = vst [vmem:[%s202 + $0x1c8] sm:$0xff] %v393
        %458 = vst [vmem:[%s202 + $0x1d0] sm:$0xff] %v394
        %459 = vst [vmem:[%s202 + $0x1d8] sm:$0xff] %v395
        %460 = vst [vmem:[%s202 + $0x1e0] sm:$0xff] %v396
        %461 = vst [vmem:[%s202 + $0x1e8] sm:$0xff] %v397
        %462 = vst [vmem:[%s202 + $0x1f0] sm:$0xff] %v398
        %463 = vst [vmem:[%s202 + $0x1f8] sm:$0xff] %v399
        %s464 = sand.u32 %s96, 1
        %s465 = scalar_lea.sflag [#allocation4], %s464
        %s466 = sand.u32 %s96, 1
        %s467 = smul.addr %s466, 512
        %s468 = scalar_lea.vmem [#allocation7], %s467
        // Predicated region
        $region37: #{tpu_custom_call.1} parent=27 // pred_check
          %p469 = pneg %p106
        $region38: #{tpu_custom_call.1} parent=27 // pred_check_branch
          %471 = sbr.rel (%p469) target = $region40
        $region39: #{tpu_custom_call.1} parent=27 // pred_region
          %s472 = smul.u32 64, %s24
          %474 = vsyncadd %s465, 0
          %s475 = sadd.s32 %s25, %s472
          %s476 = smul.addr %s475, 8
          %s477 = scalar_lea.hbm %s2, %s476
          %s478 = sshll.u32 %s468, 4
          %s479 = int_to_ptr.vmem [resolvable:$true] %s478
          %s480 = sshll.u32 %s477, 4
          %s481 = int_to_ptr.hbm [resolvable:$true] %s480
          %486 = dma.vmem_to_hbm [thread:$0]  %s479, 8192, %s481, %s465, 128, 128, 8
        $region40: #{tpu_custom_call.1} parent=27 // pred_fallthru
          _
      $region28: #{tpu_custom_call.1} parent=5 // pred_fallthru
        _
      %p487 = scmp.le.s32.totalorder 2, %s15
      // Predicated region
      $region41: #{tpu_custom_call.1} parent=5 // pred_check
        %p488 = pneg %p487
      $region42: #{tpu_custom_call.1} parent=5 // pred_check_branch
        %490 = sbr.rel (%p488) target = $region44
      $region43: #{tpu_custom_call.1} parent=5 // pred_region
        %s491 = ssub.s32 %s15, 2
        // Predicated region
        $region45: #{tpu_custom_call.1} parent=43 // pred_check
          %p492 = pneg %p112
        $region46: #{tpu_custom_call.1} parent=43 // pred_check_branch
          %494 = sbr.rel (%p492) target = $region48
        $region47: #{tpu_custom_call.1} parent=43 // pred_region
          %s495 = sand.u32 %s97, 1
          %s496 = scalar_lea.sflag [#allocation4], %s495
          %s497 = sand.u32 %s97, 1
          %s498 = smul.addr %s497, 512
          %s499 = scalar_lea.vmem [#allocation7], %s498
          %501 = dma.done %s496, 8192
        $region48: #{tpu_custom_call.1} parent=43 // pred_fallthru
          _
      $region44: #{tpu_custom_call.1} parent=5 // pred_fallthru
        _
    $region6: #{tpu_custom_call.1} parent=1 // loop_footer
      %s19 = sadd.s32 1, %s15
    $region7: #{tpu_custom_call.1} parent=1 // loop_footer_branch
      %14 = sbr.rel target = $region3
    $region8: #{tpu_custom_call.1} parent=1 // loop_exit
      _
    %502 = vsyncpa [#allocation3], 1
    %s503 = scalar_lea.sflag [#allocation3], 1
    %504 = vsyncpa %s503, 1
    %505 = vsyncpa [#allocation6], 1
    %s506 = scalar_lea.sflag [#allocation6], 1
    %507 = vsyncpa %s506, 1
    %508 = vsyncpa [#allocation4], 1
    %s509 = scalar_lea.sflag [#allocation4], 1
    %510 = vsyncpa %s509, 1

</llo_original>
